<compile_context>
chip_gen: v7x
topology: tpu7x:2x2x1
jax: 0.10.0
libtpu: 0.0.40
codegen_flags: <defaults>
</compile_context>

<pallas_src>
from abc import ABCMeta

import jax
import jax.numpy as jnp
from jax.experimental import pallas as pl
from jax.experimental.pallas import tpu as pltpu

_LANES = 1024                          # lane-dense width, multiple of 128
_TARGET_TILE_BYTES = 2 * 1024 * 1024   # 2 MiB tiles; in+out dbl-buffered = 8 MiB VMEM


def _identity_kernel(x_ref, o_ref):
    # The entire "forward" of BaseModel, expressed on the current VMEM tile.
    o_ref[...] = x_ref[...]


@jax.jit
def _passthrough(x: jax.Array) -> jax.Array:
    """Identity Pallas kernel over an arbitrary-shaped tensor (lane-dense tiling)."""
    orig_shape = x.shape
    dtype = x.dtype
    total = x.size
    if total == 0:
        # Empty tensor: nothing to copy (also avoids a zero-sized grid).
        return x

    itemsize = jnp.dtype(dtype).itemsize
    # Sublane grain so a tiled block's second-to-last dim is always legal:
    # (8,128) for f32, (16,128) for bf16, (32,128) for int8/fp8.
    grain = max(8, 32 // itemsize)

    rows = pl.cdiv(total, _LANES)
    pad = rows * _LANES - total        # 0 on the aligned fast path, else <= 1023

    flat = x.reshape(-1)
    if pad:
        flat = jnp.pad(flat, (0, pad))
    x2d = flat.reshape(rows, _LANES)

    if rows <= grain:
        # One block equal to the full array dims (always a legal block shape).
        block_rows = rows
    else:
        budget_rows = max(
            grain, (_TARGET_TILE_BYTES // (_LANES * itemsize)) // grain * grain
        )
        # ~rows/2 rounded up to the grain -> grid of >= 2 parallel steps so
        # both v7x TensorCores participate; tail block (if any) is masked.
        half_rows = pl.cdiv(pl.cdiv(rows, 2), grain) * grain
        block_rows = min(budget_rows, half_rows)

    grid = (pl.cdiv(rows, block_rows),)

    out2d = pl.pallas_call(
        _identity_kernel,
        out_shape=jax.ShapeDtypeStruct((rows, _LANES), dtype),
        grid=grid,
        in_specs=[pl.BlockSpec((block_rows, _LANES), lambda i: (i, 0))],
        out_specs=pl.BlockSpec((block_rows, _LANES), lambda i: (i, 0)),
        compiler_params=pltpu.CompilerParams(
            dimension_semantics=("parallel",),
        ),
    )(x2d)

    out_flat = out2d.reshape(-1)
    if pad:
        out_flat = out_flat[:total]
    return out_flat.reshape(orig_shape)


class BaseModel(metaclass=ABCMeta):
    """JAX/Pallas mirror of the abstract PyTorch BaseModel.

    `__init__` creates no parameters (matching the PyTorch module).  forward()
    dispatches on the training flag exactly like the original.
    """

    def __init__(self, run_pallas_identity: bool = False):
        # No parameters in the reference module.
        self.training = True
        self._run_pallas_identity = run_pallas_identity

    def train(self):
        self.training = True
        return self

    def eval(self):
        self.training = False
        return self

    def forward(self, data, **kwargs):
        if self.training:
            return self.forward_train(data, **kwargs)
        else:
            return self.forward_test(data, **kwargs)

    # TODO(synk): the reference forward_train / forward_test are abstract
    # `pass` hooks (no compute).  The optimal implementation is a no-op
    # pass-through; the Pallas identity kernel is opt-in for verification.
    def forward_train(self, data, **kwargs):
        if self._run_pallas_identity:
            return _passthrough(data)
        return data

    def forward_test(self, data, **kwargs):
        if self._run_pallas_identity:
            return _passthrough(data)
        return data


if __name__ == "__main__":
    key = jax.random.PRNGKey(0)
    x = jax.random.normal(key, (2, 4, 16, 16), dtype=jnp.float32)  # NCHW

    # Default path: identity short-circuit (zero HBM traffic).
    model = BaseModel()
    assert model.train().forward(x) is x
    assert model.eval().forward(x) is x

    # Explicit Pallas path — aligned fast path (2048 elems -> single tile).
    pallas_model = BaseModel(run_pallas_identity=True)
    out_train = jax.block_until_ready(pallas_model.train().forward(x))
    out_test = jax.block_until_ready(pallas_model.eval().forward(x))
    assert out_train.shape == x.shape and out_train.dtype == x.dtype
    assert out_test.shape == x.shape and out_test.dtype == x.dtype
    assert jnp.array_equal(out_train, x) and jnp.array_equal(out_test, x)

    # Multi-step parallel grid with a masked tail block (rows=40, block=24).
    y = jax.random.normal(jax.random.PRNGKey(1), (10, 4, 32, 32), dtype=jnp.float32)
    out_y = jax.block_until_ready(_passthrough(y))
    assert jnp.array_equal(out_y, y)

    # Misaligned total (pad <= 1023 elements + tail slice) path.
    z = jax.random.normal(jax.random.PRNGKey(2), (3, 5, 7), dtype=jnp.float32)
    out_z = jax.block_until_ready(_passthrough(z))
    assert jnp.array_equal(out_z, z)

    print("KERNEL_OK")
</pallas_src>

<mosaic_0001>
module attributes {stable_mosaic.version = 11 : i64} {
  func.func @_identity_kernel(%arg0: i32, %arg1: memref<2x1024xf32, #tpu.memory_space<vmem>>, %arg2: memref<2x1024xf32, #tpu.memory_space<vmem>>) attributes {dimension_semantics = [#tpu.dimension_semantics<parallel>], iteration_bounds = array<i64: 1>, scalar_prefetch = 0 : i64, scratch_operands = 0 : i64, tpu.core_type = #tpu.core_type<tc>, window_params = [{transform_indices = @transform_0, window_bounds = array<i64: 2, 1024>}, {transform_indices = @transform_1, window_bounds = array<i64: 2, 1024>}]} {
    %c0 = arith.constant 0 : index
    %c0_0 = arith.constant 0 : index
    %0 = vector.load %arg1[%c0, %c0_0] : memref<2x1024xf32, #tpu.memory_space<vmem>>, vector<2x1024xf32>
    %c0_1 = arith.constant 0 : index
    %c0_2 = arith.constant 0 : index
    %1 = vector.load %arg2[%c0_1, %c0_2] : memref<2x1024xf32, #tpu.memory_space<vmem>>, vector<2x1024xf32>
    tpu.vector_store %arg2[%c0_1, %c0_2], %0 {strides = array<i32>} : memref<2x1024xf32, #tpu.memory_space<vmem>>, vector<2x1024xf32>,
    return
  }
  func.func @transform_0(%arg0: i32) -> (i32, i32) {
    %c0_i32 = arith.constant 0 : i32
    %c0_i32_0 = arith.constant 0 : i32
    return %arg0, %c0_i32 : i32, i32
  }
  func.func @transform_1(%arg0: i32) -> (i32, i32) {
    %c0_i32 = arith.constant 0 : i32
    %c0_i32_0 = arith.constant 0 : i32
    return %arg0, %c0_i32 : i32, i32
  }
}

</mosaic_0001>

<llo_original>
// kernel: _passthrough.1
$region0: #{_passthrough.1}
  #allocation0 [shape = 'u32[]', space=smem, size = 0x4, offset = 0x4, fixed_abs, tag = 'smem constant byte address 0x4 - core index']
  #allocation1 [shape = 'u32[144,128]{1,0:T(1,128)}', space=vmem, size = 0x12000, scoped, tag = 'internal scratch']
  %s0 = inlined_call_operand.vmem [shape: f32[2,1024], index: 0, kind: input, shape index: {}]
  %s1 = inlined_call_operand.vmem [shape: f32[2,1024], index: 1, kind: output, shape index: {}]
  %s2 = sld [smem:[#allocation0]]
  $region14: #{_passthrough.1} parent=0
    _
  %s4 = ssub.s32 1, %s2
  %s5 = scalar_select 0, %s4, %s2
  // Predicated region
  $region2: #{_passthrough.1} parent=0 // pred_check
    _
  $region3: #{_passthrough.1} parent=0 // pred_check_branch
    %7 = sbr.rel (0) target = $region5
  $region4: #{_passthrough.1} parent=0 // pred_region
    _
  $region5: #{_passthrough.1} parent=0 // pred_fallthru
    _
  %v8 = vld [vmem:[%s0] sm:$0xff]
  %v9 = vld [vmem:[%s0 + $0x8] sm:$0xff]
  %10 = vst [vmem:[%s1] sm:$0xff] %v8
  %11 = vst [vmem:[%s1 + $0x8] sm:$0xff] %v9
  // Predicated region
  $region6: #{_passthrough.1} parent=0 // pred_check
    _
  $region7: #{_passthrough.1} parent=0 // pred_check_branch
    %13 = sbr.rel (0) target = $region9
  $region8: #{_passthrough.1} parent=0 // pred_region
    _
  $region9: #{_passthrough.1} parent=0 // pred_fallthru
    _
  // Predicated region
  $region10: #{_passthrough.1} parent=0 // pred_check
    _
  $region11: #{_passthrough.1} parent=0 // pred_check_branch
    %15 = sbr.rel (0) target = $region13
  $region12: #{_passthrough.1} parent=0 // pred_region
    _
  $region13: #{_passthrough.1} parent=0 // pred_fallthru
    _

</llo_original>
